<compile_context>
chip_gen: v6e
topology: v6e:2x2x1
jax: 0.10.0
libtpu: 0.0.40
codegen_flags: <defaults>
</compile_context>

<pallas_src>
import functools

import jax
import jax.numpy as jnp
from jax.experimental import pallas as pl
from jax.experimental.pallas import tpu as pltpu

# ----------------------------------------------------------------------------
# Model dimensions (small, deterministic, synthetic).
# ----------------------------------------------------------------------------
INPUT_DIM = 32          # input_dim of TimeFeatureExtractor
OUTPUT_DIM = 32         # output_dim of TimeFeatureExtractor
F_STAT = 32             # StatisticalNet.output_dim
F_TEMP = 32             # TemporalNet.output_dim
F_MORPH = 32            # MorphologicalNet.output_dim
TOTAL_FEATS = F_STAT + F_TEMP + F_MORPH   # fusion Linear input dim (96)

MAX_BLOCK_B = 16384     # VMEM-footprint cap (~20 MiB) -> safe on v5e/v6e/v7x


def _round_down(n, m):
    return (n // m) * m


def _time_feature_kernel(
    x_ref,      # (bb, INPUT_DIM)            f32  -- x tile, batch on sublanes
    wsub_ref,   # (INPUT_DIM, TOTAL_FEATS)   bf16 -- fused [stat|temp|morph] weight
    bsub_ref,   # (1, TOTAL_FEATS)           f32  -- fused sub-net bias row
    wf_ref,     # (TOTAL_FEATS, OUTPUT_DIM)  bf16 -- fusion weight
    bf_ref,     # (1, OUTPUT_DIM)            f32  -- fusion bias row
    o_ref,      # (bb, OUTPUT_DIM)           f32  -- output tile
):
    # MXU operands in bf16 (single pass on bf16-native MXU); f32 accumulation.
    x_bf = x_ref[...].astype(jnp.bfloat16)                       # (bb, 32)

    # --- all three sub-nets at once: Linear + ReLU (single MXU matmul) ---
    feats = jnp.dot(x_bf, wsub_ref[...],
                    preferred_element_type=jnp.float32)          # (bb, 96) f32
    feats = jnp.maximum(feats + bsub_ref[...], 0.0)              # f32 VPU epilogue

    # --- fusion: Linear -> ReLU -> Dropout(eval: identity) ---
    out = jnp.dot(feats.astype(jnp.bfloat16), wf_ref[...],
                  preferred_element_type=jnp.float32)            # (bb, 32) f32
    out = jnp.maximum(out + bf_ref[...], 0.0)
    o_ref[...] = out.astype(o_ref.dtype)


@functools.partial(jax.jit, static_argnames=("block_b",))
def time_feature_extractor(x, params, block_b=8192):
    """x: (B, INPUT_DIM) float32 -> (B, OUTPUT_DIM) float32."""
    B, D = x.shape
    assert D == INPUT_DIM
    ws, bs, wt, bt, wm, bm, wf, bf = params

    x = x.astype(jnp.float32)

    # ---- fuse the (tiny) weights once, wrapper side; cast MXU operands bf16 ----
    wsub = jnp.concatenate([ws, wt, wm], axis=1).astype(jnp.bfloat16)  # (32, 96)
    bsub = jnp.concatenate([bs, bt, bm], axis=1).astype(jnp.float32)   # (1, 96)
    wf_b = wf.astype(jnp.bfloat16)                                     # (96, 32)
    bf_f = bf.astype(jnp.float32)                                      # (1, 32)

    # ---- batch tiling (no transpose, no pad, no tail slice) ----
    block_b = max(8, min(int(block_b), MAX_BLOCK_B))
    if B <= block_b:
        bb = B                              # single block == full dim (always legal)
    else:
        bb = _round_down(block_b, 8)        # sublane-aligned tile; last block may
                                            # be partial (Pallas pads/clips it)
    grid = (pl.cdiv(B, bb),)

    def resident(shape):
        # Small weights/biases: full-array block, resident across the batch grid.
        return pl.BlockSpec(shape, lambda i: (0, 0))

    out = pl.pallas_call(
        _time_feature_kernel,
        out_shape=jax.ShapeDtypeStruct((B, OUTPUT_DIM), jnp.float32),
        grid_spec=pltpu.PrefetchScalarGridSpec(
            num_scalar_prefetch=0,
            grid=grid,
            in_specs=[
                pl.BlockSpec((bb, INPUT_DIM), lambda i: (i, 0)),
                resident((INPUT_DIM, TOTAL_FEATS)),
                resident((1, TOTAL_FEATS)),
                resident((TOTAL_FEATS, OUTPUT_DIM)),
                resident((1, OUTPUT_DIM)),
            ],
            out_specs=pl.BlockSpec((bb, OUTPUT_DIM), lambda i: (i, 0)),
        ),
        compiler_params=pltpu.CompilerParams(
            dimension_semantics=("parallel",),
            # Footprint <= ~20 MiB at the 16384 cap; 32 MiB is safe on all of
            # v5e (16 MiB scoped default), v6e, and v7x (64 MiB physical).
            vmem_limit_bytes=32 * 1024 * 1024,
        ),
    )(x, wsub, bsub, wf_b, bf_f)

    return out


def init_params(key):
    """Deterministic synthetic parameters (PyTorch-like uniform init scale)."""
    ks = jax.random.split(key, 8)

    def linear(kw, kb, fan_in, fan_out):
        bound = 1.0 / jnp.sqrt(fan_in)
        w = jax.random.uniform(kw, (fan_in, fan_out), jnp.float32, -bound, bound)
        b = jax.random.uniform(kb, (1, fan_out), jnp.float32, -bound, bound)
        return w, b

    ws, bs = linear(ks[0], ks[1], INPUT_DIM, F_STAT)
    wt, bt = linear(ks[2], ks[3], INPUT_DIM, F_TEMP)
    wm, bm = linear(ks[4], ks[5], INPUT_DIM, F_MORPH)
    wf, bf = linear(ks[6], ks[7], TOTAL_FEATS, OUTPUT_DIM)
    return (ws, bs, wt, bt, wm, bm, wf, bf)


def reference_forward(x, params):
    """Pure-JAX reference at matching precision (bf16 MXU operands, f32 acc)."""
    ws, bs, wt, bt, wm, bm, wf, bf = params
    wsub = jnp.concatenate([ws, wt, wm], axis=1).astype(jnp.bfloat16)
    bsub = jnp.concatenate([bs, bt, bm], axis=1)
    x_bf = x.astype(jnp.bfloat16)
    feats = jnp.dot(x_bf, wsub, preferred_element_type=jnp.float32) + bsub
    feats = jnp.maximum(feats, 0.0)
    out = jnp.dot(feats.astype(jnp.bfloat16), wf.astype(jnp.bfloat16),
                  preferred_element_type=jnp.float32) + bf
    return jnp.maximum(out, 0.0)        # Dropout(0.1) is identity in eval mode


if __name__ == "__main__":
    key = jax.random.PRNGKey(0)
    kx, kp = jax.random.split(key)
    params = init_params(kp)

    # Small batch, deliberately not a multiple of 8/128.
    B = 300
    x = jax.random.normal(kx, (B, INPUT_DIM), jnp.float32)
    ref = reference_forward(x, params)

    # Case 1: single block covering the whole batch (block == full array dims).
    out1 = jax.block_until_ready(time_feature_extractor(x, params))
    assert out1.shape == (B, OUTPUT_DIM)
    assert jnp.allclose(out1, ref, atol=1e-4, rtol=1e-4), "mismatch (single block)"

    # Case 2: multi-step grid with a partial edge block (exercises tiling path).
    out2 = jax.block_until_ready(time_feature_extractor(x, params, block_b=128))
    assert jnp.allclose(out2, ref, atol=1e-4, rtol=1e-4), "mismatch (tiled grid)"

    print("KERNEL_OK")
</pallas_src>

<mosaic_0001>
module attributes {stable_mosaic.version = 11 : i64} {
  func.func @_time_feature_kernel(%arg0: i32, %arg1: memref<300x32xf32, #tpu.memory_space<vmem>>, %arg2: memref<32x96xbf16, #tpu.memory_space<vmem>>, %arg3: memref<1x96xf32, #tpu.memory_space<vmem>>, %arg4: memref<96x32xbf16, #tpu.memory_space<vmem>>, %arg5: memref<1x32xf32, #tpu.memory_space<vmem>>, %arg6: memref<300x32xf32, #tpu.memory_space<vmem>>) attributes {dimension_semantics = [#tpu.dimension_semantics<parallel>], iteration_bounds = array<i64: 1>, scalar_prefetch = 0 : i64, scratch_operands = 0 : i64, tpu.core_type = #tpu.core_type<tc>, window_params = [{transform_indices = @transform_0, window_bounds = array<i64: 300, 32>}, {pipeline_mode = #tpu.pipeline_mode<synchronous>, transform_indices = @transform_1, window_bounds = array<i64: 32, 96>}, {pipeline_mode = #tpu.pipeline_mode<synchronous>, transform_indices = @transform_2, window_bounds = array<i64: 1, 96>}, {pipeline_mode = #tpu.pipeline_mode<synchronous>, transform_indices = @transform_3, window_bounds = array<i64: 96, 32>}, {pipeline_mode = #tpu.pipeline_mode<synchronous>, transform_indices = @transform_4, window_bounds = array<i64: 1, 32>}, {transform_indices = @transform_5, window_bounds = array<i64: 300, 32>}]} {
    %c0 = arith.constant 0 : index
    %c0_0 = arith.constant 0 : index
    %0 = vector.load %arg1[%c0, %c0_0] : memref<300x32xf32, #tpu.memory_space<vmem>>, vector<300x32xf32>
    %1 = arith.truncf %0 : vector<300x32xf32> to vector<300x32xbf16>
    %c0_1 = arith.constant 0 : index
    %c0_2 = arith.constant 0 : index
    %2 = vector.load %arg2[%c0_1, %c0_2] : memref<32x96xbf16, #tpu.memory_space<vmem>>, vector<32x96xbf16>
    %cst = arith.constant dense<0.000000e+00> : vector<300x96xf32>
    %3 = tpu.matmul %1, %2, %cst {dimension_numbers = #tpu.dot_dimension_numbers<[1], [0], [0], [1], [0, 0, 1, 1], [], []>} : vector<300x32xbf16>, vector<32x96xbf16>, vector<300x96xf32> -> vector<300x96xf32>
    %c0_3 = arith.constant 0 : index
    %c0_4 = arith.constant 0 : index
    %4 = vector.load %arg3[%c0_3, %c0_4] : memref<1x96xf32, #tpu.memory_space<vmem>>, vector<1x96xf32>
    %5 = vector.broadcast %4 : vector<1x96xf32> to vector<300x96xf32>
    %6 = arith.addf %3, %5 : vector<300x96xf32>
    %cst_5 = arith.constant 0.000000e+00 : f32
    %7 = vector.broadcast %cst_5 : f32 to vector<300x96xf32>
    %8 = arith.maximumf %6, %7 : vector<300x96xf32>
    %9 = arith.truncf %8 : vector<300x96xf32> to vector<300x96xbf16>
    %c0_6 = arith.constant 0 : index
    %c0_7 = arith.constant 0 : index
    %10 = vector.load %arg4[%c0_6, %c0_7] : memref<96x32xbf16, #tpu.memory_space<vmem>>, vector<96x32xbf16>
    %cst_8 = arith.constant dense<0.000000e+00> : vector<300x32xf32>
    %11 = tpu.matmul %9, %10, %cst_8 {dimension_numbers = #tpu.dot_dimension_numbers<[1], [0], [0], [1], [0, 0, 1, 1], [], []>} : vector<300x96xbf16>, vector<96x32xbf16>, vector<300x32xf32> -> vector<300x32xf32>
    %c0_9 = arith.constant 0 : index
    %c0_10 = arith.constant 0 : index
    %12 = vector.load %arg5[%c0_9, %c0_10] : memref<1x32xf32, #tpu.memory_space<vmem>>, vector<1x32xf32>
    %13 = vector.broadcast %12 : vector<1x32xf32> to vector<300x32xf32>
    %14 = arith.addf %11, %13 : vector<300x32xf32>
    %cst_11 = arith.constant 0.000000e+00 : f32
    %15 = vector.broadcast %cst_11 : f32 to vector<300x32xf32>
    %16 = arith.maximumf %14, %15 : vector<300x32xf32>
    %c0_12 = arith.constant 0 : index
    %c0_13 = arith.constant 0 : index
    %17 = vector.load %arg6[%c0_12, %c0_13] : memref<300x32xf32, #tpu.memory_space<vmem>>, vector<300x32xf32>
    tpu.vector_store %arg6[%c0_12, %c0_13], %16 {strides = array<i32>} : memref<300x32xf32, #tpu.memory_space<vmem>>, vector<300x32xf32>,
    return
  }
  func.func @transform_0(%arg0: i32) -> (i32, i32) {
    %c0_i32 = arith.constant 0 : i32
    %c0_i32_0 = arith.constant 0 : i32
    return %arg0, %c0_i32 : i32, i32
  }
  func.func @transform_1(%arg0: i32) -> (i32, i32) {
    %c0_i32 = arith.constant 0 : i32
    %c0_i32_0 = arith.constant 0 : i32
    %c0_i32_1 = arith.constant 0 : i32
    return %c0_i32, %c0_i32_0 : i32, i32
  }
  func.func @transform_2(%arg0: i32) -> (i32, i32) {
    %c0_i32 = arith.constant 0 : i32
    %c0_i32_0 = arith.constant 0 : i32
    %c0_i32_1 = arith.constant 0 : i32
    return %c0_i32, %c0_i32_0 : i32, i32
  }
  func.func @transform_3(%arg0: i32) -> (i32, i32) {
    %c0_i32 = arith.constant 0 : i32
    %c0_i32_0 = arith.constant 0 : i32
    %c0_i32_1 = arith.constant 0 : i32
    return %c0_i32, %c0_i32_0 : i32, i32
  }
  func.func @transform_4(%arg0: i32) -> (i32, i32) {
    %c0_i32 = arith.constant 0 : i32
    %c0_i32_0 = arith.constant 0 : i32
    %c0_i32_1 = arith.constant 0 : i32
    return %c0_i32, %c0_i32_0 : i32, i32
  }
  func.func @transform_5(%arg0: i32) -> (i32, i32) {
    %c0_i32 = arith.constant 0 : i32
    %c0_i32_0 = arith.constant 0 : i32
    return %arg0, %c0_i32 : i32, i32
  }
}

</mosaic_0001>

<llo_original>
// kernel: time_feature_extractor.1
$region0: #{time_feature_extractor.1}
  #allocation0 [shape = 'u32[]', space=smem, size = 0x4, offset = 0x4, fixed_abs, tag = 'smem constant byte address 0x4 - core index']
  #allocation1 [shape = 'u32[144,128]{1,0:T(1,128)}', space=vmem, size = 0x12000, scoped, tag = 'internal scratch']
  %s0 = inlined_call_operand.vmem [shape: f32[300,32], index: 0, kind: input, shape index: {}]
  %s1 = inlined_call_operand.vmem [shape: bf16[32,96], index: 1, kind: input, shape index: {}]
  %s2 = inlined_call_operand.vmem [shape: f32[1,96], index: 2, kind: input, shape index: {}]
  %s3 = inlined_call_operand.vmem [shape: bf16[96,32], index: 3, kind: input, shape index: {}]
  %s4 = inlined_call_operand.vmem [shape: f32[1,32], index: 4, kind: input, shape index: {}]
  %s5 = inlined_call_operand.vmem [shape: f32[300,32], index: 5, kind: output, shape index: {}]
  %s6 = sld [smem:[#allocation0]]
  $region30: #{time_feature_extractor.1} parent=0
    _
  %s8 = ssub.s32 1, %s6
  %s9 = scalar_select 0, %s8, %s6
  // Predicated region
  $region2: #{time_feature_extractor.1} parent=0 // pred_check
    _
  $region3: #{time_feature_extractor.1} parent=0 // pred_check_branch
    %11 = sbr.rel (0) target = $region5
  $region4: #{time_feature_extractor.1} parent=0 // pred_region
    _
  $region5: #{time_feature_extractor.1} parent=0 // pred_fallthru
    _
  // Predicated region
  $region6: #{time_feature_extractor.1} parent=0 // pred_check
    _
  $region7: #{time_feature_extractor.1} parent=0 // pred_check_branch
    %13 = sbr.rel (0) target = $region9
  $region8: #{time_feature_extractor.1} parent=0 // pred_region
    _
  $region9: #{time_feature_extractor.1} parent=0 // pred_fallthru
    _
  // Predicated region
  $region10: #{time_feature_extractor.1} parent=0 // pred_check
    _
  $region11: #{time_feature_extractor.1} parent=0 // pred_check_branch
    %15 = sbr.rel (0) target = $region13
  $region12: #{time_feature_extractor.1} parent=0 // pred_region
    _
  $region13: #{time_feature_extractor.1} parent=0 // pred_fallthru
    _
  // Predicated region
  $region14: #{time_feature_extractor.1} parent=0 // pred_check
    _
  $region15: #{time_feature_extractor.1} parent=0 // pred_check_branch
    %17 = sbr.rel (0) target = $region17
  $region16: #{time_feature_extractor.1} parent=0 // pred_region
    _
  $region17: #{time_feature_extractor.1} parent=0 // pred_fallthru
    _
  // Predicated region
  $region18: #{time_feature_extractor.1} parent=0 // pred_check
    _
  $region19: #{time_feature_extractor.1} parent=0 // pred_check_branch
    %19 = sbr.rel (0) target = $region21
  $region20: #{time_feature_extractor.1} parent=0 // pred_region
    _
  $region21: #{time_feature_extractor.1} parent=0 // pred_fallthru
    _
  %v21 = vld [vmem:[%s0] sm:$0xff]
  %v22 = vld [vmem:[%s0 + $0x8] sm:$0xff]
  %v23 = vld [vmem:[%s0 + $0x10] sm:$0xff]
  %v24 = vld [vmem:[%s0 + $0x18] sm:$0xff]
  %v25 = vld [vmem:[%s0 + $0x20] sm:$0xff]
  %v26 = vld [vmem:[%s0 + $0x28] sm:$0xff]
  %v27 = vld [vmem:[%s0 + $0x30] sm:$0xff]
  %v28 = vld [vmem:[%s0 + $0x38] sm:$0xff]
  %v29 = vld [vmem:[%s0 + $0x40] sm:$0xff]
  %v30 = vld [vmem:[%s0 + $0x48] sm:$0xff]
  %v31 = vld [vmem:[%s0 + $0x50] sm:$0xff]
  %v32 = vld [vmem:[%s0 + $0x58] sm:$0xff]
  %v33 = vld [vmem:[%s0 + $0x60] sm:$0xff]
  %v34 = vld [vmem:[%s0 + $0x68] sm:$0xff]
  %v35 = vld [vmem:[%s0 + $0x70] sm:$0xff]
  %v36 = vld [vmem:[%s0 + $0x78] sm:$0xff]
  %v37 = vld [vmem:[%s0 + $0x80] sm:$0xff]
  %v38 = vld [vmem:[%s0 + $0x88] sm:$0xff]
  %v39 = vld [vmem:[%s0 + $0x90] sm:$0xff]
  %v40 = vld [vmem:[%s0 + $0x98] sm:$0xff]
  %v41 = vld [vmem:[%s0 + $0xa0] sm:$0xff]
  %v42 = vld [vmem:[%s0 + $0xa8] sm:$0xff]
  %v43 = vld [vmem:[%s0 + $0xb0] sm:$0xff]
  %v44 = vld [vmem:[%s0 + $0xb8] sm:$0xff]
  %v45 = vld [vmem:[%s0 + $0xc0] sm:$0xff]
  %v46 = vld [vmem:[%s0 + $0xc8] sm:$0xff]
  %v47 = vld [vmem:[%s0 + $0xd0] sm:$0xff]
  %v48 = vld [vmem:[%s0 + $0xd8] sm:$0xff]
  %v49 = vld [vmem:[%s0 + $0xe0] sm:$0xff]
  %v50 = vld [vmem:[%s0 + $0xe8] sm:$0xff]
  %v51 = vld [vmem:[%s0 + $0xf0] sm:$0xff]
  %v52 = vld [vmem:[%s0 + $0xf8] sm:$0xff]
  %v53 = vld [vmem:[%s0 + $0x100] sm:$0xff]
  %v54 = vld [vmem:[%s0 + $0x108] sm:$0xff]
  %v55 = vld [vmem:[%s0 + $0x110] sm:$0xff]
  %v56 = vld [vmem:[%s0 + $0x118] sm:$0xff]
  %v57 = vld [vmem:[%s0 + $0x120] sm:$0xff]
  %v58 = vld [vmem:[%s0 + $0x128] sm:$0xf]
  %v59 = vpack.c.bf16 %v22, %v21
  %v60 = vpack.c.bf16 %v24, %v23
  %v61 = vpack.c.bf16 %v26, %v25
  %v62 = vpack.c.bf16 %v28, %v27
  %v63 = vpack.c.bf16 %v30, %v29
  %v64 = vpack.c.bf16 %v32, %v31
  %v65 = vpack.c.bf16 %v34, %v33
  %v66 = vpack.c.bf16 %v36, %v35
  %v67 = vpack.c.bf16 %v38, %v37
  %v68 = vpack.c.bf16 %v40, %v39
  %v69 = vpack.c.bf16 %v42, %v41
  %v70 = vpack.c.bf16 %v44, %v43
  %v71 = vpack.c.bf16 %v46, %v45
  %v72 = vpack.c.bf16 %v48, %v47
  %v73 = vpack.c.bf16 %v50, %v49
  %v74 = vpack.c.bf16 %v52, %v51
  %v75 = vpack.c.bf16 %v54, %v53
  %v76 = vpack.c.bf16 %v56, %v55
  %v77 = vpack.c.bf16 %v58, %v57
  %v78 = vld [vmem:[%s1] sm:$0xf]
  %v79 = vld [vmem:[%s1 + $0x4] sm:$0xf]
  %v80 = vld [vmem:[%s1 + $0x8] sm:$0xf]
  %v81 = vld [vmem:[%s1 + $0xc] sm:$0xf]
  %v82 = vld [vmem:[%s2] sm:$0x1]
  %v84 = vlaneseq
  %v85 = vshrl.u32 %v84, 7
  %v86 = vsub.s32 0, %v85
  %v87 = vrot.slane %v82, %v86
  %v93 = vunpack.c.l.b16 %v78
  %v94 = vunpack.c.l.b16 %v79
  %v95 = vunpack.c.l.b16 %v80
  %v96 = vunpack.c.l.b16 %v81
  %v97 = vpack.c.b16 %v94, %v93
  %v98 = vpack.c.b16 %v96, %v95
  %vm101 = vcmask 261120
  %v103 = vsel %vm101, %v59, 0
  %v106 = vsel %vm101, %v60, 0
  %v109 = vsel %vm101, %v61, 0
  %v112 = vsel %vm101, %v62, 0
  %v115 = vsel %vm101, %v63, 0
  %v118 = vsel %vm101, %v64, 0
  %v121 = vsel %vm101, %v65, 0
  %v124 = vsel %vm101, %v66, 0
  %v127 = vsel %vm101, %v67, 0
  %v130 = vsel %vm101, %v68, 0
  %v133 = vsel %vm101, %v69, 0
  %v136 = vsel %vm101, %v70, 0
  %v139 = vsel %vm101, %v71, 0
  %v142 = vsel %vm101, %v72, 0
  %v145 = vsel %vm101, %v73, 0
  %v148 = vsel %vm101, %v74, 0
  %v151 = vsel %vm101, %v75, 0
  %v154 = vsel %vm101, %v76, 0
  %v157 = vsel %vm101, %v77, 0
  %159 = vmatprep.subr.bf16.mxu0 0
  %160 = vmatpush1.bf16.msra.mxu0 0
  %161 = vmatprep.subr.bf16.mxu0 0
  %162 = vmatpush1.bf16.msra.mxu0 0
  %163 = vmatprep.subr.bf16.mxu0 0
  %164 = vmatpush1.bf16.msra.mxu0 0
  %165 = vmatprep.subr.bf16.mxu0 0
  %166 = vmatpush1.bf16.msra.mxu0 0
  %167 = vmatprep.subr.bf16.mxu0 0
  %168 = vmatpush1.bf16.msra.mxu0 0
  %169 = vmatprep.subr.bf16.mxu0 0
  %170 = vmatpush1.bf16.msra.mxu0 0
  %171 = vmatprep.subr.bf16.mxu0 0
  %172 = vmatpush1.bf16.msra.mxu0 %v98
  %173 = vmatprep.subr.bf16.mxu0 0
  %174 = vmatpush1.bf16.msra.mxu0 %v97
  %175 = vmatprep.subr.bf16.mxu0 0
  %176 = vmatpush2.bf16.msra.mxu0 0
  %177 = vmatprep.subr.bf16.mxu0 0
  %178 = vmatpush2.bf16.msra.mxu0 0
  %179 = vmatprep.subr.bf16.mxu0 0
  %180 = vmatpush2.bf16.msra.mxu0 0
  %181 = vmatprep.subr.bf16.mxu0 0
  %182 = vmatpush2.bf16.msra.mxu0 0
  %183 = vmatprep.subr.bf16.mxu0 0
  %184 = vmatpush2.bf16.msra.mxu0 0
  %185 = vmatprep.subr.bf16.mxu0 0
  %186 = vmatpush2.bf16.msra.mxu0 0
  %187 = vmatprep.subr.bf16.mxu0 0
  %188 = vmatpush2.bf16.msra.mxu0 0
  %189 = vmatprep.subr.bf16.mxu0 0
  %190 = vmatpush2.bf16.msra.mxu0 0
  %191 = vmatprep.mubr.bf16.mxu0 0
  %192 = vmatmul.mubr.bf16.gmra.mxu0 %v103
  %v193 = vpop.f32.mrf.mxu0
  %v194 = vadd.f32 %v87, %v193
  %v195 = vpop.f32.mrf.mxu0
  %v196 = vpop.f32.mrf.mxu0
  %v197 = vadd.f32 %v87, %v196
  %v198 = vpop.f32.mrf.mxu0
  %199 = vmatprep.mubr.bf16.mxu0 0
  %200 = vmatmul.mubr.bf16.gmra.mxu0 %v106
  %v201 = vpop.f32.mrf.mxu0
  %v202 = vadd.f32 %v87, %v201
  %v203 = vpop.f32.mrf.mxu0
  %v204 = vpop.f32.mrf.mxu0
  %v205 = vadd.f32 %v87, %v204
  %v206 = vpop.f32.mrf.mxu0
  %207 = vmatprep.mubr.bf16.mxu0 0
  %208 = vmatmul.mubr.bf16.gmra.mxu0 %v109
  %v209 = vpop.f32.mrf.mxu0
  %v210 = vadd.f32 %v87, %v209
  %v211 = vpop.f32.mrf.mxu0
  %v212 = vpop.f32.mrf.mxu0
  %v213 = vadd.f32 %v87, %v212
  %v214 = vpop.f32.mrf.mxu0
  %215 = vmatprep.mubr.bf16.mxu0 0
  %216 = vmatmul.mubr.bf16.gmra.mxu0 %v112
  %v217 = vpop.f32.mrf.mxu0
  %v218 = vadd.f32 %v87, %v217
  %v219 = vpop.f32.mrf.mxu0
  %v220 = vpop.f32.mrf.mxu0
  %v221 = vadd.f32 %v87, %v220
  %v222 = vpop.f32.mrf.mxu0
  %223 = vmatprep.mubr.bf16.mxu0 0
  %224 = vmatmul.mubr.bf16.gmra.mxu0 %v115
  %v225 = vpop.f32.mrf.mxu0
  %v226 = vadd.f32 %v87, %v225
  %v227 = vpop.f32.mrf.mxu0
  %v228 = vpop.f32.mrf.mxu0
  %v229 = vadd.f32 %v87, %v228
  %v230 = vpop.f32.mrf.mxu0
  %231 = vmatprep.mubr.bf16.mxu0 0
  %232 = vmatmul.mubr.bf16.gmra.mxu0 %v118
  %v233 = vpop.f32.mrf.mxu0
  %v234 = vadd.f32 %v87, %v233
  %v235 = vpop.f32.mrf.mxu0
  %v236 = vpop.f32.mrf.mxu0
  %v237 = vadd.f32 %v87, %v236
  %v238 = vpop.f32.mrf.mxu0
  %239 = vmatprep.mubr.bf16.mxu0 0
  %240 = vmatmul.mubr.bf16.gmra.mxu0 %v121
  %v241 = vpop.f32.mrf.mxu0
  %v242 = vadd.f32 %v87, %v241
  %v243 = vpop.f32.mrf.mxu0
  %v244 = vpop.f32.mrf.mxu0
  %v245 = vadd.f32 %v87, %v244
  %v246 = vpop.f32.mrf.mxu0
  %247 = vmatprep.mubr.bf16.mxu0 0
  %248 = vmatmul.mubr.bf16.gmra.mxu0 %v124
  %v249 = vpop.f32.mrf.mxu0
  %v250 = vadd.f32 %v87, %v249
  %v251 = vpop.f32.mrf.mxu0
  %v252 = vpop.f32.mrf.mxu0
  %v253 = vadd.f32 %v87, %v252
  %v254 = vpop.f32.mrf.mxu0
  %255 = vmatprep.mubr.bf16.mxu0 0
  %256 = vmatmul.mubr.bf16.gmra.mxu0 %v127
  %v257 = vpop.f32.mrf.mxu0
  %v258 = vadd.f32 %v87, %v257
  %v259 = vpop.f32.mrf.mxu0
  %v260 = vpop.f32.mrf.mxu0
  %v261 = vadd.f32 %v87, %v260
  %v262 = vpop.f32.mrf.mxu0
  %263 = vmatprep.mubr.bf16.mxu0 0
  %264 = vmatmul.mubr.bf16.gmra.mxu0 %v130
  %v265 = vpop.f32.mrf.mxu0
  %v266 = vadd.f32 %v87, %v265
  %v267 = vpop.f32.mrf.mxu0
  %v268 = vpop.f32.mrf.mxu0
  %v269 = vadd.f32 %v87, %v268
  %v270 = vpop.f32.mrf.mxu0
  %271 = vmatprep.mubr.bf16.mxu0 0
  %272 = vmatmul.mubr.bf16.gmra.mxu0 %v133
  %v273 = vpop.f32.mrf.mxu0
  %v274 = vadd.f32 %v87, %v273
  %v275 = vpop.f32.mrf.mxu0
  %v276 = vpop.f32.mrf.mxu0
  %v277 = vadd.f32 %v87, %v276
  %v278 = vpop.f32.mrf.mxu0
  %279 = vmatprep.mubr.bf16.mxu0 0
  %280 = vmatmul.mubr.bf16.gmra.mxu0 %v136
  %v281 = vpop.f32.mrf.mxu0
  %v282 = vadd.f32 %v87, %v281
  %v283 = vpop.f32.mrf.mxu0
  %v284 = vpop.f32.mrf.mxu0
  %v285 = vadd.f32 %v87, %v284
  %v286 = vpop.f32.mrf.mxu0
  %287 = vmatprep.mubr.bf16.mxu0 0
  %288 = vmatmul.mubr.bf16.gmra.mxu0 %v139
  %v289 = vpop.f32.mrf.mxu0
  %v290 = vadd.f32 %v87, %v289
  %v291 = vpop.f32.mrf.mxu0
  %v292 = vpop.f32.mrf.mxu0
  %v293 = vadd.f32 %v87, %v292
  %v294 = vpop.f32.mrf.mxu0
  %295 = vmatprep.mubr.bf16.mxu0 0
  %296 = vmatmul.mubr.bf16.gmra.mxu0 %v142
  %v297 = vpop.f32.mrf.mxu0
  %v298 = vadd.f32 %v87, %v297
  %v299 = vpop.f32.mrf.mxu0
  %v300 = vpop.f32.mrf.mxu0
  %v301 = vadd.f32 %v87, %v300
  %v302 = vpop.f32.mrf.mxu0
  %303 = vmatprep.mubr.bf16.mxu0 0
  %304 = vmatmul.mubr.bf16.gmra.mxu0 %v145
  %v305 = vpop.f32.mrf.mxu0
  %v306 = vadd.f32 %v87, %v305
  %v307 = vpop.f32.mrf.mxu0
  %v308 = vpop.f32.mrf.mxu0
  %v309 = vadd.f32 %v87, %v308
  %v310 = vpop.f32.mrf.mxu0
  %311 = vmatprep.mubr.bf16.mxu0 0
  %312 = vmatmul.mubr.bf16.gmra.mxu0 %v148
  %v313 = vpop.f32.mrf.mxu0
  %v314 = vadd.f32 %v87, %v313
  %v315 = vpop.f32.mrf.mxu0
  %v316 = vpop.f32.mrf.mxu0
  %v317 = vadd.f32 %v87, %v316
  %v318 = vpop.f32.mrf.mxu0
  %319 = vmatprep.mubr.bf16.mxu0 0
  %320 = vmatmul.mubr.bf16.gmra.mxu0 %v151
  %v321 = vpop.f32.mrf.mxu0
  %v322 = vadd.f32 %v87, %v321
  %v323 = vpop.f32.mrf.mxu0
  %v324 = vpop.f32.mrf.mxu0
  %v325 = vadd.f32 %v87, %v324
  %v326 = vpop.f32.mrf.mxu0
  %327 = vmatprep.mubr.bf16.mxu0 0
  %328 = vmatmul.mubr.bf16.gmra.mxu0 %v154
  %v329 = vpop.f32.mrf.mxu0
  %v330 = vadd.f32 %v87, %v329
  %v331 = vpop.f32.mrf.mxu0
  %v332 = vpop.f32.mrf.mxu0
  %v333 = vadd.f32 %v87, %v332
  %v334 = vpop.f32.mrf.mxu0
  %335 = vmatprep.mubr.bf16.mxu0 0
  %336 = vmatmul.mubr.bf16.gmra.mxu0 %v157
  %v337 = vpop.f32.mrf.mxu0
  %v338 = vadd.f32 %v87, %v337
  %v339 = vpop.f32.mrf.mxu0
  %v340 = vpop.f32.mrf.mxu0
  %v341 = vadd.f32 %v87, %v340
  %v342 = vpop.f32.mrf.mxu0
  %343 = vdwg.mxu0
  %v344 = vmax.f32 %v194, 0.0
  %v345 = vmax.f32 %v197, 0.0
  %v346 = vmax.f32 %v202, 0.0
  %v347 = vmax.f32 %v205, 0.0
  %v348 = vmax.f32 %v210, 0.0
  %v349 = vmax.f32 %v213, 0.0
  %v350 = vmax.f32 %v218, 0.0
  %v351 = vmax.f32 %v221, 0.0
  %v352 = vmax.f32 %v226, 0.0
  %v353 = vmax.f32 %v229, 0.0
  %v354 = vmax.f32 %v234, 0.0
  %v355 = vmax.f32 %v237, 0.0
  %v356 = vmax.f32 %v242, 0.0
  %v357 = vmax.f32 %v245, 0.0
  %v358 = vmax.f32 %v250, 0.0
  %v359 = vmax.f32 %v253, 0.0
  %v360 = vmax.f32 %v258, 0.0
  %v361 = vmax.f32 %v261, 0.0
  %v362 = vmax.f32 %v266, 0.0
  %v363 = vmax.f32 %v269, 0.0
  %v364 = vmax.f32 %v274, 0.0
  %v365 = vmax.f32 %v277, 0.0
  %v366 = vmax.f32 %v282, 0.0
  %v367 = vmax.f32 %v285, 0.0
  %v368 = vmax.f32 %v290, 0.0
  %v369 = vmax.f32 %v293, 0.0
  %v370 = vmax.f32 %v298, 0.0
  %v371 = vmax.f32 %v301, 0.0
  %v372 = vmax.f32 %v306, 0.0
  %v373 = vmax.f32 %v309, 0.0
  %v374 = vmax.f32 %v314, 0.0
  %v375 = vmax.f32 %v317, 0.0
  %v376 = vmax.f32 %v322, 0.0
  %v377 = vmax.f32 %v325, 0.0
  %v378 = vmax.f32 %v330, 0.0
  %v379 = vmax.f32 %v333, 0.0
  %v380 = vmax.f32 %v338, 0.0
  %v381 = vmax.f32 %v341, 0.0
  %v382 = vpack.c.bf16 %v345, %v344
  %v383 = vpack.c.bf16 %v347, %v346
  %v384 = vpack.c.bf16 %v349, %v348
  %v385 = vpack.c.bf16 %v351, %v350
  %v386 = vpack.c.bf16 %v353, %v352
  %v387 = vpack.c.bf16 %v355, %v354
  %v388 = vpack.c.bf16 %v357, %v356
  %v389 = vpack.c.bf16 %v359, %v358
  %v390 = vpack.c.bf16 %v361, %v360
  %v391 = vpack.c.bf16 %v363, %v362
  %v392 = vpack.c.bf16 %v365, %v364
  %v393 = vpack.c.bf16 %v367, %v366
  %v394 = vpack.c.bf16 %v369, %v368
  %v395 = vpack.c.bf16 %v371, %v370
  %v396 = vpack.c.bf16 %v373, %v372
  %v397 = vpack.c.bf16 %v375, %v374
  %v398 = vpack.c.bf16 %v377, %v376
  %v399 = vpack.c.bf16 %v379, %v378
  %v400 = vpack.c.bf16 %v381, %v380
  %v401 = vld [vmem:[%s3] sm:$0xf]
  %v402 = vld [vmem:[%s3 + $0x4] sm:$0xf]
  %v403 = vld [vmem:[%s3 + $0x8] sm:$0xf]
  %v404 = vld [vmem:[%s3 + $0xc] sm:$0xf]
  %v405 = vld [vmem:[%s3 + $0x10] sm:$0xf]
  %v406 = vld [vmem:[%s3 + $0x14] sm:$0xf]
  %v407 = vld [vmem:[%s3 + $0x18] sm:$0xf]
  %v408 = vld [vmem:[%s3 + $0x1c] sm:$0xf]
  %v409 = vld [vmem:[%s3 + $0x20] sm:$0xf]
  %v410 = vld [vmem:[%s3 + $0x24] sm:$0xf]
  %v411 = vld [vmem:[%s3 + $0x28] sm:$0xf]
  %v412 = vld [vmem:[%s3 + $0x2c] sm:$0xf]
  %v413 = vld [vmem:[%s4] sm:$0x1]
  %v415 = vlaneseq
  %v416 = vshrl.u32 %v415, 7
  %v417 = vsub.s32 0, %v416
  %v418 = vrot.slane %v413, %v417
  %v432 = vunpack.c.l.b16 %v401
  %v433 = vunpack.c.l.b16 %v402
  %v434 = vunpack.c.l.b16 %v403
  %v435 = vunpack.c.l.b16 %v404
  %v436 = vunpack.c.l.b16 %v405
  %v437 = vunpack.c.l.b16 %v406
  %v438 = vunpack.c.l.b16 %v407
  %v439 = vunpack.c.l.b16 %v408
  %v440 = vunpack.c.l.b16 %v409
  %v441 = vunpack.c.l.b16 %v410
  %v442 = vunpack.c.l.b16 %v411
  %v443 = vunpack.c.l.b16 %v412
  %v444 = vpack.c.b16 %v433, %v432
  %v445 = vpack.c.b16 %v435, %v434
  %v446 = vpack.c.b16 %v437, %v436
  %v447 = vpack.c.b16 %v439, %v438
  %v448 = vpack.c.b16 %v441, %v440
  %v449 = vpack.c.b16 %v443, %v442
  %vm456 = vcmask 785408
  %v458 = vsel %vm456, %v382, 0
  %v461 = vsel %vm456, %v383, 0
  %v464 = vsel %vm456, %v384, 0
  %v467 = vsel %vm456, %v385, 0
  %v470 = vsel %vm456, %v386, 0
  %v473 = vsel %vm456, %v387, 0
  %v476 = vsel %vm456, %v388, 0
  %v479 = vsel %vm456, %v389, 0
  %v482 = vsel %vm456, %v390, 0
  %v485 = vsel %vm456, %v391, 0
  %v488 = vsel %vm456, %v392, 0
  %v491 = vsel %vm456, %v393, 0
  %v494 = vsel %vm456, %v394, 0
  %v497 = vsel %vm456, %v395, 0
  %v500 = vsel %vm456, %v396, 0
  %v503 = vsel %vm456, %v397, 0
  %v506 = vsel %vm456, %v398, 0
  %v509 = vsel %vm456, %v399, 0
  %v512 = vsel %vm456, %v400, 0
  %514 = vmatprep.subr.bf16.mxu0 0
  %515 = vmatpush1.bf16.msra.mxu0 0
  %516 = vmatprep.subr.bf16.mxu0 0
  %517 = vmatpush1.bf16.msra.mxu0 0
  %518 = vmatprep.subr.bf16.mxu0 0
  %519 = vmatpush1.bf16.msra.mxu0 %v449
  %520 = vmatprep.subr.bf16.mxu0 0
  %521 = vmatpush1.bf16.msra.mxu0 %v448
  %522 = vmatprep.subr.bf16.mxu0 0
  %523 = vmatpush1.bf16.msra.mxu0 %v447
  %524 = vmatprep.subr.bf16.mxu0 0
  %525 = vmatpush1.bf16.msra.mxu0 %v446
  %526 = vmatprep.subr.bf16.mxu0 0
  %527 = vmatpush1.bf16.msra.mxu0 %v445
  %528 = vmatprep.subr.bf16.mxu0 0
  %529 = vmatpush1.bf16.msra.mxu0 %v444
  %530 = vmatprep.subr.bf16.mxu0 0
  %531 = vmatpush2.bf16.msra.mxu0 0
  %532 = vmatprep.subr.bf16.mxu0 0
  %533 = vmatpush2.bf16.msra.mxu0 0
  %534 = vmatprep.subr.bf16.mxu0 0
  %535 = vmatpush2.bf16.msra.mxu0 0
  %536 = vmatprep.subr.bf16.mxu0 0
  %537 = vmatpush2.bf16.msra.mxu0 0
  %538 = vmatprep.subr.bf16.mxu0 0
  %539 = vmatpush2.bf16.msra.mxu0 0
  %540 = vmatprep.subr.bf16.mxu0 0
  %541 = vmatpush2.bf16.msra.mxu0 0
  %542 = vmatprep.subr.bf16.mxu0 0
  %543 = vmatpush2.bf16.msra.mxu0 0
  %544 = vmatprep.subr.bf16.mxu0 0
  %545 = vmatpush2.bf16.msra.mxu0 0
  %546 = vmatprep.mubr.bf16.mxu0 0
  %547 = vmatmul.mubr.bf16.gmra.mxu0 %v458
  %v548 = vpop.f32.mrf.mxu0
  %v549 = vadd.f32 %v418, %v548
  %v550 = vpop.f32.mrf.mxu0
  %v551 = vpop.f32.mrf.mxu0
  %v552 = vadd.f32 %v418, %v551
  %v553 = vpop.f32.mrf.mxu0
  %554 = vmatprep.mubr.bf16.mxu0 0
  %555 = vmatmul.mubr.bf16.gmra.mxu0 %v461
  %v556 = vpop.f32.mrf.mxu0
  %v557 = vadd.f32 %v418, %v556
  %v558 = vpop.f32.mrf.mxu0
  %v559 = vpop.f32.mrf.mxu0
  %v560 = vadd.f32 %v418, %v559
  %v561 = vpop.f32.mrf.mxu0
  %562 = vmatprep.mubr.bf16.mxu0 0
  %563 = vmatmul.mubr.bf16.gmra.mxu0 %v464
  %v564 = vpop.f32.mrf.mxu0
  %v565 = vadd.f32 %v418, %v564
  %v566 = vpop.f32.mrf.mxu0
  %v567 = vpop.f32.mrf.mxu0
  %v568 = vadd.f32 %v418, %v567
  %v569 = vpop.f32.mrf.mxu0
  %570 = vmatprep.mubr.bf16.mxu0 0
  %571 = vmatmul.mubr.bf16.gmra.mxu0 %v467
  %v572 = vpop.f32.mrf.mxu0
  %v573 = vadd.f32 %v418, %v572
  %v574 = vpop.f32.mrf.mxu0
  %v575 = vpop.f32.mrf.mxu0
  %v576 = vadd.f32 %v418, %v575
  %v577 = vpop.f32.mrf.mxu0
  %578 = vmatprep.mubr.bf16.mxu0 0
  %579 = vmatmul.mubr.bf16.gmra.mxu0 %v470
  %v580 = vpop.f32.mrf.mxu0
  %v581 = vadd.f32 %v418, %v580
  %v582 = vpop.f32.mrf.mxu0
  %v583 = vpop.f32.mrf.mxu0
  %v584 = vadd.f32 %v418, %v583
  %v585 = vpop.f32.mrf.mxu0
  %586 = vmatprep.mubr.bf16.mxu0 0
  %587 = vmatmul.mubr.bf16.gmra.mxu0 %v473
  %v588 = vpop.f32.mrf.mxu0
  %v589 = vadd.f32 %v418, %v588
  %v590 = vpop.f32.mrf.mxu0
  %v591 = vpop.f32.mrf.mxu0
  %v592 = vadd.f32 %v418, %v591
  %v593 = vpop.f32.mrf.mxu0
  %594 = vmatprep.mubr.bf16.mxu0 0
  %595 = vmatmul.mubr.bf16.gmra.mxu0 %v476
  %v596 = vpop.f32.mrf.mxu0
  %v597 = vadd.f32 %v418, %v596
  %v598 = vpop.f32.mrf.mxu0
  %v599 = vpop.f32.mrf.mxu0
  %v600 = vadd.f32 %v418, %v599
  %v601 = vpop.f32.mrf.mxu0
  %602 = vmatprep.mubr.bf16.mxu0 0
  %603 = vmatmul.mubr.bf16.gmra.mxu0 %v479
  %v604 = vpop.f32.mrf.mxu0
  %v605 = vadd.f32 %v418, %v604
  %v606 = vpop.f32.mrf.mxu0
  %v607 = vpop.f32.mrf.mxu0
  %v608 = vadd.f32 %v418, %v607
  %v609 = vpop.f32.mrf.mxu0
  %610 = vmatprep.mubr.bf16.mxu0 0
  %611 = vmatmul.mubr.bf16.gmra.mxu0 %v482
  %v612 = vpop.f32.mrf.mxu0
  %v613 = vadd.f32 %v418, %v612
  %v614 = vpop.f32.mrf.mxu0
  %v615 = vpop.f32.mrf.mxu0
  %v616 = vadd.f32 %v418, %v615
  %v617 = vpop.f32.mrf.mxu0
  %618 = vmatprep.mubr.bf16.mxu0 0
  %619 = vmatmul.mubr.bf16.gmra.mxu0 %v485
  %v620 = vpop.f32.mrf.mxu0
  %v621 = vadd.f32 %v418, %v620
  %v622 = vpop.f32.mrf.mxu0
  %v623 = vpop.f32.mrf.mxu0
  %v624 = vadd.f32 %v418, %v623
  %v625 = vpop.f32.mrf.mxu0
  %626 = vmatprep.mubr.bf16.mxu0 0
  %627 = vmatmul.mubr.bf16.gmra.mxu0 %v488
  %v628 = vpop.f32.mrf.mxu0
  %v629 = vadd.f32 %v418, %v628
  %v630 = vpop.f32.mrf.mxu0
  %v631 = vpop.f32.mrf.mxu0
  %v632 = vadd.f32 %v418, %v631
  %v633 = vpop.f32.mrf.mxu0
  %634 = vmatprep.mubr.bf16.mxu0 0
  %635 = vmatmul.mubr.bf16.gmra.mxu0 %v491
  %v636 = vpop.f32.mrf.mxu0
  %v637 = vadd.f32 %v418, %v636
  %v638 = vpop.f32.mrf.mxu0
  %v639 = vpop.f32.mrf.mxu0
  %v640 = vadd.f32 %v418, %v639
  %v641 = vpop.f32.mrf.mxu0
  %642 = vmatprep.mubr.bf16.mxu0 0
  %643 = vmatmul.mubr.bf16.gmra.mxu0 %v494
  %v644 = vpop.f32.mrf.mxu0
  %v645 = vadd.f32 %v418, %v644
  %v646 = vpop.f32.mrf.mxu0
  %v647 = vpop.f32.mrf.mxu0
  %v648 = vadd.f32 %v418, %v647
  %v649 = vpop.f32.mrf.mxu0
  %650 = vmatprep.mubr.bf16.mxu0 0
  %651 = vmatmul.mubr.bf16.gmra.mxu0 %v497
  %v652 = vpop.f32.mrf.mxu0
  %v653 = vadd.f32 %v418, %v652
  %v654 = vpop.f32.mrf.mxu0
  %v655 = vpop.f32.mrf.mxu0
  %v656 = vadd.f32 %v418, %v655
  %v657 = vpop.f32.mrf.mxu0
  %658 = vmatprep.mubr.bf16.mxu0 0
  %659 = vmatmul.mubr.bf16.gmra.mxu0 %v500
  %v660 = vpop.f32.mrf.mxu0
  %v661 = vadd.f32 %v418, %v660
  %v662 = vpop.f32.mrf.mxu0
  %v663 = vpop.f32.mrf.mxu0
  %v664 = vadd.f32 %v418, %v663
  %v665 = vpop.f32.mrf.mxu0
  %666 = vmatprep.mubr.bf16.mxu0 0
  %667 = vmatmul.mubr.bf16.gmra.mxu0 %v503
  %v668 = vpop.f32.mrf.mxu0
  %v669 = vadd.f32 %v418, %v668
  %v670 = vpop.f32.mrf.mxu0
  %v671 = vpop.f32.mrf.mxu0
  %v672 = vadd.f32 %v418, %v671
  %v673 = vpop.f32.mrf.mxu0
  %674 = vmatprep.mubr.bf16.mxu0 0
  %675 = vmatmul.mubr.bf16.gmra.mxu0 %v506
  %v676 = vpop.f32.mrf.mxu0
  %v677 = vadd.f32 %v418, %v676
  %v678 = vpop.f32.mrf.mxu0
  %v679 = vpop.f32.mrf.mxu0
  %v680 = vadd.f32 %v418, %v679
  %v681 = vpop.f32.mrf.mxu0
  %682 = vmatprep.mubr.bf16.mxu0 0
  %683 = vmatmul.mubr.bf16.gmra.mxu0 %v509
  %v684 = vpop.f32.mrf.mxu0
  %v685 = vadd.f32 %v418, %v684
  %v686 = vpop.f32.mrf.mxu0
  %v687 = vpop.f32.mrf.mxu0
  %v688 = vadd.f32 %v418, %v687
  %v689 = vpop.f32.mrf.mxu0
  %690 = vmatprep.mubr.bf16.mxu0 0
  %691 = vmatmul.mubr.bf16.gmra.mxu0 %v512
  %v692 = vpop.f32.mrf.mxu0
  %v693 = vadd.f32 %v418, %v692
  %v694 = vpop.f32.mrf.mxu0
  %v695 = vpop.f32.mrf.mxu0
  %v696 = vadd.f32 %v418, %v695
  %v697 = vpop.f32.mrf.mxu0
  %698 = vdwg.mxu0
  %v699 = vmax.f32 %v549, 0.0
  %v700 = vmax.f32 %v552, 0.0
  %v701 = vmax.f32 %v557, 0.0
  %v702 = vmax.f32 %v560, 0.0
  %v703 = vmax.f32 %v565, 0.0
  %v704 = vmax.f32 %v568, 0.0
  %v705 = vmax.f32 %v573, 0.0
  %v706 = vmax.f32 %v576, 0.0
  %v707 = vmax.f32 %v581, 0.0
  %v708 = vmax.f32 %v584, 0.0
  %v709 = vmax.f32 %v589, 0.0
  %v710 = vmax.f32 %v592, 0.0
  %v711 = vmax.f32 %v597, 0.0
  %v712 = vmax.f32 %v600, 0.0
  %v713 = vmax.f32 %v605, 0.0
  %v714 = vmax.f32 %v608, 0.0
  %v715 = vmax.f32 %v613, 0.0
  %v716 = vmax.f32 %v616, 0.0
  %v717 = vmax.f32 %v621, 0.0
  %v718 = vmax.f32 %v624, 0.0
  %v719 = vmax.f32 %v629, 0.0
  %v720 = vmax.f32 %v632, 0.0
  %v721 = vmax.f32 %v637, 0.0
  %v722 = vmax.f32 %v640, 0.0
  %v723 = vmax.f32 %v645, 0.0
  %v724 = vmax.f32 %v648, 0.0
  %v725 = vmax.f32 %v653, 0.0
  %v726 = vmax.f32 %v656, 0.0
  %v727 = vmax.f32 %v661, 0.0
  %v728 = vmax.f32 %v664, 0.0
  %v729 = vmax.f32 %v669, 0.0
  %v730 = vmax.f32 %v672, 0.0
  %v731 = vmax.f32 %v677, 0.0
  %v732 = vmax.f32 %v680, 0.0
  %v733 = vmax.f32 %v685, 0.0
  %v734 = vmax.f32 %v688, 0.0
  %v735 = vmax.f32 %v693, 0.0
  %v736 = vmax.f32 %v696, 0.0
  %737 = vst.msk [vmem:[%s5] sm:$0xff] %vm101, %v699
  %738 = vst.msk [vmem:[%s5 + $0x8] sm:$0xff] %vm101, %v700
  %739 = vst.msk [vmem:[%s5 + $0x10] sm:$0xff] %vm101, %v701
  %740 = vst.msk [vmem:[%s5 + $0x18] sm:$0xff] %vm101, %v702
  %741 = vst.msk [vmem:[%s5 + $0x20] sm:$0xff] %vm101, %v703
  %742 = vst.msk [vmem:[%s5 + $0x28] sm:$0xff] %vm101, %v704
  %743 = vst.msk [vmem:[%s5 + $0x30] sm:$0xff] %vm101, %v705
  %744 = vst.msk [vmem:[%s5 + $0x38] sm:$0xff] %vm101, %v706
  %745 = vst.msk [vmem:[%s5 + $0x40] sm:$0xff] %vm101, %v707
  %746 = vst.msk [vmem:[%s5 + $0x48] sm:$0xff] %vm101, %v708
  %747 = vst.msk [vmem:[%s5 + $0x50] sm:$0xff] %vm101, %v709
  %748 = vst.msk [vmem:[%s5 + $0x58] sm:$0xff] %vm101, %v710
  %749 = vst.msk [vmem:[%s5 + $0x60] sm:$0xff] %vm101, %v711
  %750 = vst.msk [vmem:[%s5 + $0x68] sm:$0xff] %vm101, %v712
  %751 = vst.msk [vmem:[%s5 + $0x70] sm:$0xff] %vm101, %v713
  %752 = vst.msk [vmem:[%s5 + $0x78] sm:$0xff] %vm101, %v714
  %753 = vst.msk [vmem:[%s5 + $0x80] sm:$0xff] %vm101, %v715
  %754 = vst.msk [vmem:[%s5 + $0x88] sm:$0xff] %vm101, %v716
  %755 = vst.msk [vmem:[%s5 + $0x90] sm:$0xff] %vm101, %v717
  %756 = vst.msk [vmem:[%s5 + $0x98] sm:$0xff] %vm101, %v718
  %757 = vst.msk [vmem:[%s5 + $0xa0] sm:$0xff] %vm101, %v719
  %758 = vst.msk [vmem:[%s5 + $0xa8] sm:$0xff] %vm101, %v720
  %759 = vst.msk [vmem:[%s5 + $0xb0] sm:$0xff] %vm101, %v721
  %760 = vst.msk [vmem:[%s5 + $0xb8] sm:$0xff] %vm101, %v722
  %761 = vst.msk [vmem:[%s5 + $0xc0] sm:$0xff] %vm101, %v723
  %762 = vst.msk [vmem:[%s5 + $0xc8] sm:$0xff] %vm101, %v724
  %763 = vst.msk [vmem:[%s5 + $0xd0] sm:$0xff] %vm101, %v725
  %764 = vst.msk [vmem:[%s5 + $0xd8] sm:$0xff] %vm101, %v726
  %765 = vst.msk [vmem:[%s5 + $0xe0] sm:$0xff] %vm101, %v727
  %766 = vst.msk [vmem:[%s5 + $0xe8] sm:$0xff] %vm101, %v728
  %767 = vst.msk [vmem:[%s5 + $0xf0] sm:$0xff] %vm101, %v729
  %768 = vst.msk [vmem:[%s5 + $0xf8] sm:$0xff] %vm101, %v730
  %769 = vst.msk [vmem:[%s5 + $0x100] sm:$0xff] %vm101, %v731
  %770 = vst.msk [vmem:[%s5 + $0x108] sm:$0xff] %vm101, %v732
  %771 = vst.msk [vmem:[%s5 + $0x110] sm:$0xff] %vm101, %v733
  %772 = vst.msk [vmem:[%s5 + $0x118] sm:$0xff] %vm101, %v734
  %773 = vst.msk [vmem:[%s5 + $0x120] sm:$0xff] %vm101, %v735
  %vm774 = vcmask 257024
  %775 = vst.msk [vmem:[%s5 + $0x128] sm:$0xf] %vm774, %v736
  // Predicated region
  $region22: #{time_feature_extractor.1} parent=0 // pred_check
    _
  $region23: #{time_feature_extractor.1} parent=0 // pred_check_branch
    %777 = sbr.rel (0) target = $region25
  $region24: #{time_feature_extractor.1} parent=0 // pred_region
    _
  $region25: #{time_feature_extractor.1} parent=0 // pred_fallthru
    _
  // Predicated region
  $region26: #{time_feature_extractor.1} parent=0 // pred_check
    _
  $region27: #{time_feature_extractor.1} parent=0 // pred_check_branch
    %779 = sbr.rel (0) target = $region29
  $region28: #{time_feature_extractor.1} parent=0 // pred_region
    _
  $region29: #{time_feature_extractor.1} parent=0 // pred_fallthru
    _

</llo_original>
